<compile_context>
chip_gen: v7x
topology: tpu7x:2x2x1
jax: 0.10.0
libtpu: 0.0.40
codegen_flags: <defaults>
</compile_context>

<pallas_src>
import jax
import jax.numpy as jnp
from jax.experimental import pallas as pl
from jax.experimental.pallas import tpu as pltpu

# --- module constants (synthetic, mirrors ada_aug op-name lists) -------------
TS_OPS_NAMES = [
    "identity", "time_warp", "window_warp", "window_slice", "scaling",
    "magnitude_warp", "jitter", "permutation", "rotation", "spawner",
    "dtw_warp", "random_guided_warp",
]
OPS_LEN = len(TS_OPS_NAMES)              # 12
PROJ_ADDITION = 0
PROJ_OUT = 2 * OPS_LEN + PROJ_ADDITION   # 24

IN_FEATURES = 16
N_LAYERS = 2
N_HIDDEN = 32
LABEL_NUM = 4
LABEL_EMBED = 8
N_LABEL = LABEL_EMBED                    # label_num > 0 and label_embed > 0
FEA_IN = IN_FEATURES - N_LABEL           # 8 : input width of feature_embed
AGG_DIM = N_HIDDEN + N_LABEL             # 40 : width of concat([h, y_t])


def _round_up(n, m):
    return ((n + m - 1) // m) * m


# --- Pallas kernel: the whole MLP hot path -----------------------------------
def projection_kernel(x_ref, y_ref,
                      wfe_ref, bfe_ref,      # feature_embed Linear (8, 32)
                      wle_ref, ble_ref,      # label_embed   Linear (4, 8)
                      w1h_ref, w1y_ref, b1_ref,  # hidden Linear split: (32,32), (8,32)
                      w2_ref, b2_ref,        # projection head (32, 24)
                      out_ref):
    x = x_ref[...]                                                   # (BT, 8)
    y = y_ref[...]                                                   # (BT, 4)

    # feature_embed + ReLU
    h = jnp.dot(x, wfe_ref[...], preferred_element_type=jnp.float32) + bfe_ref[...]
    h = jnp.maximum(h, 0.0)                                          # (BT, 32)

    # label_embed (linear)
    yt = jnp.dot(y, wle_ref[...], preferred_element_type=jnp.float32) + ble_ref[...]  # (BT, 8)

    # hidden layer on concat([h, yt]) expressed as a split matmul:
    #   concat([h, yt]) @ W1  ==  h @ W1[:32] + yt @ W1[32:]
    z = (jnp.dot(h, w1h_ref[...], preferred_element_type=jnp.float32)
         + jnp.dot(yt, w1y_ref[...], preferred_element_type=jnp.float32)
         + b1_ref[...])
    z = jnp.maximum(z, 0.0)                                          # (BT, 32)

    # projection head, written at its true 24-lane width.
    out_ref[...] = (jnp.dot(z, w2_ref[...], preferred_element_type=jnp.float32)
                    + b2_ref[...])                                   # (BT, 24)


def projection_tseries_forward(x, y, params, *, bt=4096):
    """x: (bs, FEA_IN), y: (bs, LABEL_NUM) -> (bs, PROJ_OUT). f32."""
    bs = x.shape[0]
    x = x.astype(jnp.float32)
    y = y.astype(jnp.float32)

    # Pad the batch only to a multiple of 8 (sublane alignment); the grid
    # uses cdiv so the last block may be partial (handled by Pallas).
    padded_bs = _round_up(bs, 8)
    if padded_bs != bs:
        x = jnp.pad(x, ((0, padded_bs - bs), (0, 0)))
        y = jnp.pad(y, ((0, padded_bs - bs), (0, 0)))

    BT = min(bt, padded_bs)               # bt must be a multiple of 8
    grid = (pl.cdiv(padded_bs, BT),)

    # Hidden-layer weight split (trace-time static slices).
    w1h = params["w1"][:N_HIDDEN, :]      # (32, 32)
    w1y = params["w1"][N_HIDDEN:, :]      # (8, 32)

    const = lambda i: (0, 0)              # weights: VMEM-resident, single DMA

    flops = 2 * padded_bs * (FEA_IN * N_HIDDEN + LABEL_NUM * LABEL_EMBED
                             + AGG_DIM * N_HIDDEN + N_HIDDEN * PROJ_OUT)
    weight_bytes = 4 * (FEA_IN * N_HIDDEN + N_HIDDEN
                        + LABEL_NUM * LABEL_EMBED + LABEL_EMBED
                        + AGG_DIM * N_HIDDEN + N_HIDDEN
                        + N_HIDDEN * PROJ_OUT + PROJ_OUT)
    bytes_accessed = padded_bs * 4 * (FEA_IN + LABEL_NUM + PROJ_OUT) + weight_bytes

    out_padded = pl.pallas_call(
        projection_kernel,
        out_shape=jax.ShapeDtypeStruct((padded_bs, PROJ_OUT), jnp.float32),
        grid_spec=pltpu.PrefetchScalarGridSpec(
            num_scalar_prefetch=0,
            grid=grid,
            in_specs=[
                pl.BlockSpec((BT, FEA_IN), lambda i: (i, 0)),        # x
                pl.BlockSpec((BT, LABEL_NUM), lambda i: (i, 0)),     # y
                pl.BlockSpec((FEA_IN, N_HIDDEN), const),             # wfe
                pl.BlockSpec((1, N_HIDDEN), const),                  # bfe
                pl.BlockSpec((LABEL_NUM, LABEL_EMBED), const),       # wle
                pl.BlockSpec((1, LABEL_EMBED), const),               # ble
                pl.BlockSpec((N_HIDDEN, N_HIDDEN), const),           # w1h
                pl.BlockSpec((N_LABEL, N_HIDDEN), const),            # w1y
                pl.BlockSpec((1, N_HIDDEN), const),                  # b1
                pl.BlockSpec((N_HIDDEN, PROJ_OUT), const),           # w2
                pl.BlockSpec((1, PROJ_OUT), const),                  # b2
            ],
            out_specs=pl.BlockSpec((BT, PROJ_OUT), lambda i: (i, 0)),
        ),
        compiler_params=pltpu.CompilerParams(
            dimension_semantics=("parallel",),
            vmem_limit_bytes=32 * 1024 * 1024,   # above v5e's 16 MiB default scope
        ),
        cost_estimate=pl.CostEstimate(flops=flops, transcendentals=0,
                                      bytes_accessed=bytes_accessed),
    )(x, y,
      params["wfe"], params["bfe"],
      params["wle"], params["ble"],
      w1h, w1y, params["b1"],
      params["w2"], params["b2"])

    return out_padded[:bs]


# --- deterministic parameter init (PyTorch Linear default: U(-1/sqrt(fan_in))) -
def init_params(key):
    def linear(key, fan_in, fan_out):
        k1, k2 = jax.random.split(key)
        bound = 1.0 / jnp.sqrt(fan_in)
        w = jax.random.uniform(k1, (fan_in, fan_out), jnp.float32, -bound, bound)
        b = jax.random.uniform(k2, (1, fan_out), jnp.float32, -bound, bound)
        return w, b

    k = jax.random.split(key, 4)
    wfe, bfe = linear(k[0], FEA_IN, N_HIDDEN)            # feature_embed
    wle, ble = linear(k[1], LABEL_NUM, LABEL_EMBED)      # label_embed
    w1, b1 = linear(k[2], AGG_DIM, N_HIDDEN)             # hidden layer (in = 40)
    w2, b2 = linear(k[3], N_HIDDEN, PROJ_OUT)            # projection head
    return {"wfe": wfe, "bfe": bfe, "wle": wle, "ble": ble,
            "w1": w1, "b1": b1, "w2": w2, "b2": b2}


# --- pure-JAX reference for verification (mirrors the PyTorch graph) ----------
def reference_forward(x, y, p):
    h = jax.nn.relu(x @ p["wfe"] + p["bfe"])
    yt = y @ p["wle"] + p["ble"]
    agg = jnp.concatenate([h, yt], axis=1)
    z = jax.nn.relu(agg @ p["w1"] + p["b1"])
    return z @ p["w2"] + p["b2"]


if __name__ == "__main__":
    key = jax.random.PRNGKey(0)
    kx, ky, kp = jax.random.split(key, 3)
    params = init_params(kp)

    # --- Test 1: tiny batch (single grid step, batch padded 2 -> 8) ----------
    bs = 2
    x = jax.random.normal(kx, (bs, FEA_IN), jnp.float32)      # (2, 8)
    y = jax.random.normal(ky, (bs, LABEL_NUM), jnp.float32)   # (2, 4)
    out = jax.block_until_ready(projection_tseries_forward(x, y, params))
    ref = reference_forward(x, y, params)
    assert out.shape == (bs, PROJ_OUT)
    assert jnp.allclose(out, ref, atol=1e-4, rtol=1e-4), "mismatch vs reference (bs=2)"

    # --- Test 2: multi-step pipeline, batch not a multiple of 8, partial last
    # block (bs=300 -> padded 304, BT=128 -> grid=3 with a 48-row tail). ------
    bs2 = 300
    x2 = jax.random.normal(kx, (bs2, FEA_IN), jnp.float32)
    y2 = jax.random.normal(ky, (bs2, LABEL_NUM), jnp.float32)
    out2 = jax.block_until_ready(projection_tseries_forward(x2, y2, params, bt=128))
    ref2 = reference_forward(x2, y2, params)
    assert out2.shape == (bs2, PROJ_OUT)
    assert jnp.allclose(out2, ref2, atol=1e-4, rtol=1e-4), "mismatch vs reference (bs=300)"

    print("KERNEL_OK")
</pallas_src>

<mosaic_0001>
module attributes {stable_mosaic.version = 11 : i64} {
  func.func @projection_kernel(%arg0: i32, %arg1: memref<8x8xf32, #tpu.memory_space<vmem>>, %arg2: memref<8x4xf32, #tpu.memory_space<vmem>>, %arg3: memref<8x32xf32, #tpu.memory_space<vmem>>, %arg4: memref<1x32xf32, #tpu.memory_space<vmem>>, %arg5: memref<4x8xf32, #tpu.memory_space<vmem>>, %arg6: memref<1x8xf32, #tpu.memory_space<vmem>>, %arg7: memref<32x32xf32, #tpu.memory_space<vmem>>, %arg8: memref<8x32xf32, #tpu.memory_space<vmem>>, %arg9: memref<1x32xf32, #tpu.memory_space<vmem>>, %arg10: memref<32x24xf32, #tpu.memory_space<vmem>>, %arg11: memref<1x24xf32, #tpu.memory_space<vmem>>, %arg12: memref<8x24xf32, #tpu.memory_space<vmem>>) attributes {dimension_semantics = [#tpu.dimension_semantics<parallel>], iteration_bounds = array<i64: 1>, scalar_prefetch = 0 : i64, scratch_operands = 0 : i64, tpu.core_type = #tpu.core_type<tc>, window_params = [{transform_indices = @transform_0, window_bounds = array<i64: 8, 8>}, {transform_indices = @transform_1, window_bounds = array<i64: 8, 4>}, {pipeline_mode = #tpu.pipeline_mode<synchronous>, transform_indices = @transform_2, window_bounds = array<i64: 8, 32>}, {pipeline_mode = #tpu.pipeline_mode<synchronous>, transform_indices = @transform_3, window_bounds = array<i64: 1, 32>}, {pipeline_mode = #tpu.pipeline_mode<synchronous>, transform_indices = @transform_4, window_bounds = array<i64: 4, 8>}, {pipeline_mode = #tpu.pipeline_mode<synchronous>, transform_indices = @transform_5, window_bounds = array<i64: 1, 8>}, {pipeline_mode = #tpu.pipeline_mode<synchronous>, transform_indices = @transform_6, window_bounds = array<i64: 32, 32>}, {pipeline_mode = #tpu.pipeline_mode<synchronous>, transform_indices = @transform_7, window_bounds = array<i64: 8, 32>}, {pipeline_mode = #tpu.pipeline_mode<synchronous>, transform_indices = @transform_8, window_bounds = array<i64: 1, 32>}, {pipeline_mode = #tpu.pipeline_mode<synchronous>, transform_indices = @transform_9, window_bounds = array<i64: 32, 24>}, {pipeline_mode = #tpu.pipeline_mode<synchronous>, transform_indices = @transform_10, window_bounds = array<i64: 1, 24>}, {transform_indices = @transform_11, window_bounds = array<i64: 8, 24>}]} {
    %c0 = arith.constant 0 : index
    %c0_0 = arith.constant 0 : index
    %0 = vector.load %arg1[%c0, %c0_0] : memref<8x8xf32, #tpu.memory_space<vmem>>, vector<8x8xf32>
    %c0_1 = arith.constant 0 : index
    %c0_2 = arith.constant 0 : index
    %1 = vector.load %arg2[%c0_1, %c0_2] : memref<8x4xf32, #tpu.memory_space<vmem>>, vector<8x4xf32>
    %c0_3 = arith.constant 0 : index
    %c0_4 = arith.constant 0 : index
    %2 = vector.load %arg3[%c0_3, %c0_4] : memref<8x32xf32, #tpu.memory_space<vmem>>, vector<8x32xf32>
    %cst = arith.constant dense<0.000000e+00> : vector<8x32xf32>
    %3 = tpu.matmul %0, %2, %cst {dimension_numbers = #tpu.dot_dimension_numbers<[1], [0], [0], [1], [0, 0, 1, 1], [], []>} : vector<8x8xf32>, vector<8x32xf32>, vector<8x32xf32> -> vector<8x32xf32>
    %c0_5 = arith.constant 0 : index
    %c0_6 = arith.constant 0 : index
    %4 = vector.load %arg4[%c0_5, %c0_6] : memref<1x32xf32, #tpu.memory_space<vmem>>, vector<1x32xf32>
    %5 = vector.broadcast %4 : vector<1x32xf32> to vector<8x32xf32>
    %6 = arith.addf %3, %5 : vector<8x32xf32>
    %cst_7 = arith.constant 0.000000e+00 : f32
    %7 = vector.broadcast %cst_7 : f32 to vector<8x32xf32>
    %8 = arith.maximumf %6, %7 : vector<8x32xf32>
    %c0_8 = arith.constant 0 : index
    %c0_9 = arith.constant 0 : index
    %9 = vector.load %arg5[%c0_8, %c0_9] : memref<4x8xf32, #tpu.memory_space<vmem>>, vector<4x8xf32>
    %cst_10 = arith.constant dense<0.000000e+00> : vector<8x8xf32>
    %10 = tpu.matmul %1, %9, %cst_10 {dimension_numbers = #tpu.dot_dimension_numbers<[1], [0], [0], [1], [0, 0, 1, 1], [], []>} : vector<8x4xf32>, vector<4x8xf32>, vector<8x8xf32> -> vector<8x8xf32>
    %c0_11 = arith.constant 0 : index
    %c0_12 = arith.constant 0 : index
    %11 = vector.load %arg6[%c0_11, %c0_12] : memref<1x8xf32, #tpu.memory_space<vmem>>, vector<1x8xf32>
    %12 = vector.broadcast %11 : vector<1x8xf32> to vector<8x8xf32>
    %13 = arith.addf %10, %12 : vector<8x8xf32>
    %c0_13 = arith.constant 0 : index
    %c0_14 = arith.constant 0 : index
    %14 = vector.load %arg7[%c0_13, %c0_14] : memref<32x32xf32, #tpu.memory_space<vmem>>, vector<32x32xf32>
    %cst_15 = arith.constant dense<0.000000e+00> : vector<8x32xf32>
    %15 = tpu.matmul %8, %14, %cst_15 {dimension_numbers = #tpu.dot_dimension_numbers<[1], [0], [0], [1], [0, 0, 1, 1], [], []>} : vector<8x32xf32>, vector<32x32xf32>, vector<8x32xf32> -> vector<8x32xf32>
    %c0_16 = arith.constant 0 : index
    %c0_17 = arith.constant 0 : index
    %16 = vector.load %arg8[%c0_16, %c0_17] : memref<8x32xf32, #tpu.memory_space<vmem>>, vector<8x32xf32>
    %cst_18 = arith.constant dense<0.000000e+00> : vector<8x32xf32>
    %17 = tpu.matmul %13, %16, %cst_18 {dimension_numbers = #tpu.dot_dimension_numbers<[1], [0], [0], [1], [0, 0, 1, 1], [], []>} : vector<8x8xf32>, vector<8x32xf32>, vector<8x32xf32> -> vector<8x32xf32>
    %18 = arith.addf %15, %17 : vector<8x32xf32>
    %c0_19 = arith.constant 0 : index
    %c0_20 = arith.constant 0 : index
    %19 = vector.load %arg9[%c0_19, %c0_20] : memref<1x32xf32, #tpu.memory_space<vmem>>, vector<1x32xf32>
    %20 = vector.broadcast %19 : vector<1x32xf32> to vector<8x32xf32>
    %21 = arith.addf %18, %20 : vector<8x32xf32>
    %cst_21 = arith.constant 0.000000e+00 : f32
    %22 = vector.broadcast %cst_21 : f32 to vector<8x32xf32>
    %23 = arith.maximumf %21, %22 : vector<8x32xf32>
    %c0_22 = arith.constant 0 : index
    %c0_23 = arith.constant 0 : index
    %24 = vector.load %arg10[%c0_22, %c0_23] : memref<32x24xf32, #tpu.memory_space<vmem>>, vector<32x24xf32>
    %cst_24 = arith.constant dense<0.000000e+00> : vector<8x24xf32>
    %25 = tpu.matmul %23, %24, %cst_24 {dimension_numbers = #tpu.dot_dimension_numbers<[1], [0], [0], [1], [0, 0, 1, 1], [], []>} : vector<8x32xf32>, vector<32x24xf32>, vector<8x24xf32> -> vector<8x24xf32>
    %c0_25 = arith.constant 0 : index
    %c0_26 = arith.constant 0 : index
    %26 = vector.load %arg11[%c0_25, %c0_26] : memref<1x24xf32, #tpu.memory_space<vmem>>, vector<1x24xf32>
    %27 = vector.broadcast %26 : vector<1x24xf32> to vector<8x24xf32>
    %28 = arith.addf %25, %27 : vector<8x24xf32>
    %c0_27 = arith.constant 0 : index
    %c0_28 = arith.constant 0 : index
    %29 = vector.load %arg12[%c0_27, %c0_28] : memref<8x24xf32, #tpu.memory_space<vmem>>, vector<8x24xf32>
    tpu.vector_store %arg12[%c0_27, %c0_28], %28 {strides = array<i32>} : memref<8x24xf32, #tpu.memory_space<vmem>>, vector<8x24xf32>,
    return
  }
  func.func @transform_0(%arg0: i32) -> (i32, i32) {
    %c0_i32 = arith.constant 0 : i32
    %c0_i32_0 = arith.constant 0 : i32
    return %arg0, %c0_i32 : i32, i32
  }
  func.func @transform_1(%arg0: i32) -> (i32, i32) {
    %c0_i32 = arith.constant 0 : i32
    %c0_i32_0 = arith.constant 0 : i32
    return %arg0, %c0_i32 : i32, i32
  }
  func.func @transform_2(%arg0: i32) -> (i32, i32) {
    %c0_i32 = arith.constant 0 : i32
    %c0_i32_0 = arith.constant 0 : i32
    %c0_i32_1 = arith.constant 0 : i32
    return %c0_i32, %c0_i32_0 : i32, i32
  }
  func.func @transform_3(%arg0: i32) -> (i32, i32) {
    %c0_i32 = arith.constant 0 : i32
    %c0_i32_0 = arith.constant 0 : i32
    %c0_i32_1 = arith.constant 0 : i32
    return %c0_i32, %c0_i32_0 : i32, i32
  }
  func.func @transform_4(%arg0: i32) -> (i32, i32) {
    %c0_i32 = arith.constant 0 : i32
    %c0_i32_0 = arith.constant 0 : i32
    %c0_i32_1 = arith.constant 0 : i32
    return %c0_i32, %c0_i32_0 : i32, i32
  }
  func.func @transform_5(%arg0: i32) -> (i32, i32) {
    %c0_i32 = arith.constant 0 : i32
    %c0_i32_0 = arith.constant 0 : i32
    %c0_i32_1 = arith.constant 0 : i32
    return %c0_i32, %c0_i32_0 : i32, i32
  }
  func.func @transform_6(%arg0: i32) -> (i32, i32) {
    %c0_i32 = arith.constant 0 : i32
    %c0_i32_0 = arith.constant 0 : i32
    %c0_i32_1 = arith.constant 0 : i32
    return %c0_i32, %c0_i32_0 : i32, i32
  }
  func.func @transform_7(%arg0: i32) -> (i32, i32) {
    %c0_i32 = arith.constant 0 : i32
    %c0_i32_0 = arith.constant 0 : i32
    %c0_i32_1 = arith.constant 0 : i32
    return %c0_i32, %c0_i32_0 : i32, i32
  }
  func.func @transform_8(%arg0: i32) -> (i32, i32) {
    %c0_i32 = arith.constant 0 : i32
    %c0_i32_0 = arith.constant 0 : i32
    %c0_i32_1 = arith.constant 0 : i32
    return %c0_i32, %c0_i32_0 : i32, i32
  }
  func.func @transform_9(%arg0: i32) -> (i32, i32) {
    %c0_i32 = arith.constant 0 : i32
    %c0_i32_0 = arith.constant 0 : i32
    %c0_i32_1 = arith.constant 0 : i32
    return %c0_i32, %c0_i32_0 : i32, i32
  }
  func.func @transform_10(%arg0: i32) -> (i32, i32) {
    %c0_i32 = arith.constant 0 : i32
    %c0_i32_0 = arith.constant 0 : i32
    %c0_i32_1 = arith.constant 0 : i32
    return %c0_i32, %c0_i32_0 : i32, i32
  }
  func.func @transform_11(%arg0: i32) -> (i32, i32) {
    %c0_i32 = arith.constant 0 : i32
    %c0_i32_0 = arith.constant 0 : i32
    return %arg0, %c0_i32 : i32, i32
  }
}

</mosaic_0001>

<llo_original>
// kernel: tpu_custom_call.1
$region0: #{tpu_custom_call.1}
  #allocation0 [shape = 'u32[]', space=smem, size = 0x4, offset = 0x4, fixed_abs, tag = 'smem constant byte address 0x4 - core index']
  #allocation1 [shape = 'u32[144,128]{1,0:T(1,128)}', space=vmem, size = 0x12000, scoped, tag = 'internal scratch']
  %s0 = inlined_call_operand.vmem [shape: f32[8,8], index: 0, kind: input, shape index: {}]
  %s1 = inlined_call_operand.vmem [shape: f32[8,4], index: 1, kind: input, shape index: {}]
  %s2 = inlined_call_operand.vmem [shape: f32[8,32], index: 2, kind: input, shape index: {}]
  %s3 = inlined_call_operand.vmem [shape: f32[1,32], index: 3, kind: input, shape index: {}]
  %s4 = inlined_call_operand.vmem [shape: f32[4,8], index: 4, kind: input, shape index: {}]
  %s5 = inlined_call_operand.vmem [shape: f32[1,8], index: 5, kind: input, shape index: {}]
  %s6 = inlined_call_operand.vmem [shape: f32[32,32], index: 6, kind: input, shape index: {}]
  %s7 = inlined_call_operand.vmem [shape: f32[8,32], index: 7, kind: input, shape index: {}]
  %s8 = inlined_call_operand.vmem [shape: f32[1,32], index: 8, kind: input, shape index: {}]
  %s9 = inlined_call_operand.vmem [shape: f32[32,24], index: 9, kind: input, shape index: {}]
  %s10 = inlined_call_operand.vmem [shape: f32[1,24], index: 10, kind: input, shape index: {}]
  %s11 = inlined_call_operand.hbm [shape: f32[8,24], index: 11, kind: output, shape index: {}]
  %s12 = sld [smem:[#allocation0]]
  $region54: #{tpu_custom_call.1} parent=0
    _
  %s14 = ssub.s32 1, %s12
  %s15 = scalar_select 0, %s14, %s12
  $region1: #{tpu_custom_call.1} parent=0
    #allocation2 [shape = 'u8[4096]{0}', space=vmem, size = 0x1000, scoped, tag = 'output window, operand 0, single buffered']
    #allocation3 [shape = 's32[1]{0}', space=sflag, size = 0x4, scoped, tag = 'scoped memory for tpu_custom_call.1']
    %16 = vsyncpa [#allocation3], 0
    // Predicated region
    $region2: #{tpu_custom_call.1} parent=1 // pred_check
      _
    $region3: #{tpu_custom_call.1} parent=1 // pred_check_branch
      %18 = sbr.rel (0) target = $region5
    $region4: #{tpu_custom_call.1} parent=1 // pred_region
      _
    $region5: #{tpu_custom_call.1} parent=1 // pred_fallthru
      _
    // Predicated region
    $region6: #{tpu_custom_call.1} parent=1 // pred_check
      _
    $region7: #{tpu_custom_call.1} parent=1 // pred_check_branch
      %20 = sbr.rel (0) target = $region9
    $region8: #{tpu_custom_call.1} parent=1 // pred_region
      _
    $region9: #{tpu_custom_call.1} parent=1 // pred_fallthru
      _
    // Predicated region
    $region10: #{tpu_custom_call.1} parent=1 // pred_check
      _
    $region11: #{tpu_custom_call.1} parent=1 // pred_check_branch
      %22 = sbr.rel (0) target = $region13
    $region12: #{tpu_custom_call.1} parent=1 // pred_region
      _
    $region13: #{tpu_custom_call.1} parent=1 // pred_fallthru
      _
    // Predicated region
    $region14: #{tpu_custom_call.1} parent=1 // pred_check
      _
    $region15: #{tpu_custom_call.1} parent=1 // pred_check_branch
      %24 = sbr.rel (0) target = $region17
    $region16: #{tpu_custom_call.1} parent=1 // pred_region
      _
    $region17: #{tpu_custom_call.1} parent=1 // pred_fallthru
      _
    // Predicated region
    $region18: #{tpu_custom_call.1} parent=1 // pred_check
      _
    $region19: #{tpu_custom_call.1} parent=1 // pred_check_branch
      %26 = sbr.rel (0) target = $region21
    $region20: #{tpu_custom_call.1} parent=1 // pred_region
      _
    $region21: #{tpu_custom_call.1} parent=1 // pred_fallthru
      _
    // Predicated region
    $region22: #{tpu_custom_call.1} parent=1 // pred_check
      _
    $region23: #{tpu_custom_call.1} parent=1 // pred_check_branch
      %28 = sbr.rel (0) target = $region25
    $region24: #{tpu_custom_call.1} parent=1 // pred_region
      _
    $region25: #{tpu_custom_call.1} parent=1 // pred_fallthru
      _
    // Predicated region
    $region26: #{tpu_custom_call.1} parent=1 // pred_check
      _
    $region27: #{tpu_custom_call.1} parent=1 // pred_check_branch
      %30 = sbr.rel (0) target = $region29
    $region28: #{tpu_custom_call.1} parent=1 // pred_region
      _
    $region29: #{tpu_custom_call.1} parent=1 // pred_fallthru
      _
    // Predicated region
    $region30: #{tpu_custom_call.1} parent=1 // pred_check
      _
    $region31: #{tpu_custom_call.1} parent=1 // pred_check_branch
      %32 = sbr.rel (0) target = $region33
    $region32: #{tpu_custom_call.1} parent=1 // pred_region
      _
    $region33: #{tpu_custom_call.1} parent=1 // pred_fallthru
      _
    // Predicated region
    $region34: #{tpu_custom_call.1} parent=1 // pred_check
      _
    $region35: #{tpu_custom_call.1} parent=1 // pred_check_branch
      %34 = sbr.rel (0) target = $region37
    $region36: #{tpu_custom_call.1} parent=1 // pred_region
      _
    $region37: #{tpu_custom_call.1} parent=1 // pred_fallthru
      _
    // Predicated region
    $region38: #{tpu_custom_call.1} parent=1 // pred_check
      _
    $region39: #{tpu_custom_call.1} parent=1 // pred_check_branch
      %36 = sbr.rel (0) target = $region41
    $region40: #{tpu_custom_call.1} parent=1 // pred_region
      _
    $region41: #{tpu_custom_call.1} parent=1 // pred_fallthru
      _
    // Predicated region
    $region42: #{tpu_custom_call.1} parent=1 // pred_check
      _
    $region43: #{tpu_custom_call.1} parent=1 // pred_check_branch
      %38 = sbr.rel (0) target = $region45
    $region44: #{tpu_custom_call.1} parent=1 // pred_region
      _
    $region45: #{tpu_custom_call.1} parent=1 // pred_fallthru
      _
    %v39 = vld [vmem:[%s0] sm:$0xff]
    %v40 = vld [vmem:[%s1] sm:$0xff]
    %v41 = vld [vmem:[%s2] sm:$0xff]
    %v42 = vld [vmem:[%s3] sm:$0x1]
    %v44 = vlaneseq
    %v45 = vshrl.u32 %v44, 7
    %v46 = vsub.s32 0, %v45
    %v47 = vrot.slane %v42, %v46
    %vm49 = vcmask 64512
    %v51 = vsel %vm49, %v39, 0
    %53 = vmatprep.subr.mxu0 0.0
    %54 = vmatpush1.msra.mxu0 %v41
    %55 = vmatprep.subr.mxu0 0.0
    %56 = vmatpush1.msra.mxu0 0.0
    %57 = vmatprep.subr.mxu0 0.0
    %58 = vmatpush1.msra.mxu0 0.0
    %59 = vmatprep.subr.mxu0 0.0
    %60 = vmatpush1.msra.mxu0 0.0
    %61 = vmatprep.subr.mxu0 0.0
    %62 = vmatpush1.msra.mxu0 0.0
    %63 = vmatprep.subr.mxu0 0.0
    %64 = vmatpush1.msra.mxu0 0.0
    %65 = vmatprep.subr.mxu0 0.0
    %66 = vmatpush1.msra.mxu0 0.0
    %67 = vmatprep.subr.mxu0 0.0
    %68 = vmatpush1.msra.mxu0 0.0
    %69 = vmatprep.subr.mxu0 0.0
    %70 = vmatpush1.msra.mxu0 0.0
    %71 = vmatprep.subr.mxu0 0.0
    %72 = vmatpush1.msra.mxu0 0.0
    %73 = vmatprep.subr.mxu0 0.0
    %74 = vmatpush1.msra.mxu0 0.0
    %75 = vmatprep.subr.mxu0 0.0
    %76 = vmatpush1.msra.mxu0 0.0
    %77 = vmatprep.subr.mxu0 0.0
    %78 = vmatpush1.msra.mxu0 0.0
    %79 = vmatprep.subr.mxu0 0.0
    %80 = vmatpush1.msra.mxu0 0.0
    %81 = vmatprep.subr.mxu0 0.0
    %82 = vmatpush1.msra.mxu0 0.0
    %83 = vmatprep.subr.mxu0 0.0
    %84 = vmatpush1.msra.mxu0 0.0
    %85 = vmatprep.subr.mxu0 0.0
    %86 = vmatpush1.msra.mxu0 0.0
    %87 = vmatprep.subr.mxu0 0.0
    %88 = vmatpush1.msra.mxu0 0.0
    %89 = vmatprep.subr.mxu0 0.0
    %90 = vmatpush1.msra.mxu0 0.0
    %91 = vmatprep.subr.mxu0 0.0
    %92 = vmatpush1.msra.mxu0 0.0
    %93 = vmatprep.subr.mxu0 0.0
    %94 = vmatpush1.msra.mxu0 0.0
    %95 = vmatprep.subr.mxu0 0.0
    %96 = vmatpush1.msra.mxu0 0.0
    %97 = vmatprep.subr.mxu0 0.0
    %98 = vmatpush1.msra.mxu0 0.0
    %99 = vmatprep.subr.mxu0 0.0
    %100 = vmatpush1.msra.mxu0 0.0
    %101 = vmatprep.subr.mxu0 0.0
    %102 = vmatpush1.msra.mxu0 0.0
    %103 = vmatprep.subr.mxu0 0.0
    %104 = vmatpush1.msra.mxu0 0.0
    %105 = vmatprep.subr.mxu0 0.0
    %106 = vmatpush1.msra.mxu0 0.0
    %107 = vmatprep.subr.mxu0 0.0
    %108 = vmatpush1.msra.mxu0 0.0
    %109 = vmatprep.subr.mxu0 0.0
    %110 = vmatpush1.msra.mxu0 0.0
    %111 = vmatprep.subr.mxu0 0.0
    %112 = vmatpush1.msra.mxu0 0.0
    %113 = vmatprep.subr.mxu0 0.0
    %114 = vmatpush1.msra.mxu0 0.0
    %115 = vmatprep.subr.mxu0 0.0
    %116 = vmatpush1.msra.mxu0 0.0
    %117 = vmatprep.mubr.f32.mxu0 0.0
    %118 = vmatmul.mubr.f32.gmra.mrb[0].mxu0 %v51
    %v119 = vpop.f32.mrb[0].mxu0
    %v120 = vadd.f32 %v47, %v119
    %v121 = vpop.f32.mrb[0].mxu0
    %122 = vdwg.mxu0
    %v123 = vmax.f32 %v120, 0.0
    %v124 = vld [vmem:[%s4] sm:$0xf]
    %v125 = vld [vmem:[%s5] sm:$0x1]
    %v127 = vlaneseq
    %v128 = vshrl.u32 %v127, 7
    %v129 = vsub.s32 0, %v128
    %v130 = vrot.slane %v125, %v129
    %vm132 = vcmask 31744
    %v134 = vsel %vm132, %v40, 0
    %vm136 = vcmask 1043456
    %v138 = vsel %vm136, %v124, 0
    %140 = vmatprep.subr.mxu0 0.0
    %141 = vmatpush1.msra.mxu0 %v138
    %142 = vmatprep.subr.mxu0 0.0
    %143 = vmatpush1.msra.mxu0 0.0
    %144 = vmatprep.subr.mxu0 0.0
    %145 = vmatpush1.msra.mxu0 0.0
    %146 = vmatprep.subr.mxu0 0.0
    %147 = vmatpush1.msra.mxu0 0.0
    %148 = vmatprep.subr.mxu0 0.0
    %149 = vmatpush1.msra.mxu0 0.0
    %150 = vmatprep.subr.mxu0 0.0
    %151 = vmatpush1.msra.mxu0 0.0
    %152 = vmatprep.subr.mxu0 0.0
    %153 = vmatpush1.msra.mxu0 0.0
    %154 = vmatprep.subr.mxu0 0.0
    %155 = vmatpush1.msra.mxu0 0.0
    %156 = vmatprep.subr.mxu0 0.0
    %157 = vmatpush1.msra.mxu0 0.0
    %158 = vmatprep.subr.mxu0 0.0
    %159 = vmatpush1.msra.mxu0 0.0
    %160 = vmatprep.subr.mxu0 0.0
    %161 = vmatpush1.msra.mxu0 0.0
    %162 = vmatprep.subr.mxu0 0.0
    %163 = vmatpush1.msra.mxu0 0.0
    %164 = vmatprep.subr.mxu0 0.0
    %165 = vmatpush1.msra.mxu0 0.0
    %166 = vmatprep.subr.mxu0 0.0
    %167 = vmatpush1.msra.mxu0 0.0
    %168 = vmatprep.subr.mxu0 0.0
    %169 = vmatpush1.msra.mxu0 0.0
    %170 = vmatprep.subr.mxu0 0.0
    %171 = vmatpush1.msra.mxu0 0.0
    %172 = vmatprep.subr.mxu0 0.0
    %173 = vmatpush1.msra.mxu0 0.0
    %174 = vmatprep.subr.mxu0 0.0
    %175 = vmatpush1.msra.mxu0 0.0
    %176 = vmatprep.subr.mxu0 0.0
    %177 = vmatpush1.msra.mxu0 0.0
    %178 = vmatprep.subr.mxu0 0.0
    %179 = vmatpush1.msra.mxu0 0.0
    %180 = vmatprep.subr.mxu0 0.0
    %181 = vmatpush1.msra.mxu0 0.0
    %182 = vmatprep.subr.mxu0 0.0
    %183 = vmatpush1.msra.mxu0 0.0
    %184 = vmatprep.subr.mxu0 0.0
    %185 = vmatpush1.msra.mxu0 0.0
    %186 = vmatprep.subr.mxu0 0.0
    %187 = vmatpush1.msra.mxu0 0.0
    %188 = vmatprep.subr.mxu0 0.0
    %189 = vmatpush1.msra.mxu0 0.0
    %190 = vmatprep.subr.mxu0 0.0
    %191 = vmatpush1.msra.mxu0 0.0
    %192 = vmatprep.subr.mxu0 0.0
    %193 = vmatpush1.msra.mxu0 0.0
    %194 = vmatprep.subr.mxu0 0.0
    %195 = vmatpush1.msra.mxu0 0.0
    %196 = vmatprep.subr.mxu0 0.0
    %197 = vmatpush1.msra.mxu0 0.0
    %198 = vmatprep.subr.mxu0 0.0
    %199 = vmatpush1.msra.mxu0 0.0
    %200 = vmatprep.subr.mxu0 0.0
    %201 = vmatpush1.msra.mxu0 0.0
    %202 = vmatprep.subr.mxu0 0.0
    %203 = vmatpush1.msra.mxu0 0.0
    %204 = vmatprep.mubr.f32.mxu0 0.0
    %205 = vmatmul.mubr.f32.gmra.mrb[0].mxu0 %v134
    %v206 = vpop.f32.mrb[0].mxu0
    %v207 = vadd.f32 %v130, %v206
    %v208 = vpop.f32.mrb[0].mxu0
    %209 = vdwg.mxu0
    %v210 = vld [vmem:[%s6] sm:$0xff]
    %v211 = vld [vmem:[%s6 + $0x8] sm:$0xff]
    %v212 = vld [vmem:[%s6 + $0x10] sm:$0xff]
    %v213 = vld [vmem:[%s6 + $0x18] sm:$0xff]
    %v214 = vld [vmem:[%s7] sm:$0xff]
    %v216 = vsel %vm49, %v207, 0
    %218 = vmatprep.subr.mxu0 0.0
    %219 = vmatpush1.msra.mxu0 %v214
    %220 = vmatprep.subr.mxu0 0.0
    %221 = vmatpush1.msra.mxu0 0.0
    %222 = vmatprep.subr.mxu0 0.0
    %223 = vmatpush1.msra.mxu0 0.0
    %224 = vmatprep.subr.mxu0 0.0
    %225 = vmatpush1.msra.mxu0 0.0
    %226 = vmatprep.subr.mxu0 0.0
    %227 = vmatpush1.msra.mxu0 0.0
    %228 = vmatprep.subr.mxu0 0.0
    %229 = vmatpush1.msra.mxu0 0.0
    %230 = vmatprep.subr.mxu0 0.0
    %231 = vmatpush1.msra.mxu0 0.0
    %232 = vmatprep.subr.mxu0 0.0
    %233 = vmatpush1.msra.mxu0 0.0
    %234 = vmatprep.subr.mxu0 0.0
    %235 = vmatpush1.msra.mxu0 0.0
    %236 = vmatprep.subr.mxu0 0.0
    %237 = vmatpush1.msra.mxu0 0.0
    %238 = vmatprep.subr.mxu0 0.0
    %239 = vmatpush1.msra.mxu0 0.0
    %240 = vmatprep.subr.mxu0 0.0
    %241 = vmatpush1.msra.mxu0 0.0
    %242 = vmatprep.subr.mxu0 0.0
    %243 = vmatpush1.msra.mxu0 0.0
    %244 = vmatprep.subr.mxu0 0.0
    %245 = vmatpush1.msra.mxu0 0.0
    %246 = vmatprep.subr.mxu0 0.0
    %247 = vmatpush1.msra.mxu0 0.0
    %248 = vmatprep.subr.mxu0 0.0
    %249 = vmatpush1.msra.mxu0 0.0
    %250 = vmatprep.subr.mxu0 0.0
    %251 = vmatpush1.msra.mxu0 0.0
    %252 = vmatprep.subr.mxu0 0.0
    %253 = vmatpush1.msra.mxu0 0.0
    %254 = vmatprep.subr.mxu0 0.0
    %255 = vmatpush1.msra.mxu0 0.0
    %256 = vmatprep.subr.mxu0 0.0
    %257 = vmatpush1.msra.mxu0 0.0
    %258 = vmatprep.subr.mxu0 0.0
    %259 = vmatpush1.msra.mxu0 0.0
    %260 = vmatprep.subr.mxu0 0.0
    %261 = vmatpush1.msra.mxu0 0.0
    %262 = vmatprep.subr.mxu0 0.0
    %263 = vmatpush1.msra.mxu0 0.0
    %264 = vmatprep.subr.mxu0 0.0
    %265 = vmatpush1.msra.mxu0 0.0
    %266 = vmatprep.subr.mxu0 0.0
    %267 = vmatpush1.msra.mxu0 0.0
    %268 = vmatprep.subr.mxu0 0.0
    %269 = vmatpush1.msra.mxu0 0.0
    %270 = vmatprep.subr.mxu0 0.0
    %271 = vmatpush1.msra.mxu0 0.0
    %272 = vmatprep.subr.mxu0 0.0
    %273 = vmatpush1.msra.mxu0 0.0
    %274 = vmatprep.subr.mxu0 0.0
    %275 = vmatpush1.msra.mxu0 0.0
    %276 = vmatprep.subr.mxu0 0.0
    %277 = vmatpush1.msra.mxu0 0.0
    %278 = vmatprep.subr.mxu0 0.0
    %279 = vmatpush1.msra.mxu0 0.0
    %280 = vmatprep.subr.mxu0 0.0
    %281 = vmatpush1.msra.mxu0 0.0
    %282 = vmatprep.mubr.f32.mxu0 0.0
    %283 = vmatmul.mubr.f32.gmra.mrb[0].mxu0 %v216
    %v284 = vpop.f32.mrb[0].mxu0
    %v285 = vadd.f32 0.0, %v284
    %v286 = vpop.f32.mrb[0].mxu0
    %287 = vdwg.mxu0
    %vm288 = vcmask 261120
    %v290 = vsel %vm288, %v123, 0
    %292 = vmatprep.subr.mxu0 0.0
    %293 = vmatpush1.msra.mxu0 %v210
    %294 = vmatprep.subr.mxu0 0.0
    %295 = vmatpush1.msra.mxu0 %v211
    %296 = vmatprep.subr.mxu0 0.0
    %297 = vmatpush1.msra.mxu0 %v212
    %298 = vmatprep.subr.mxu0 0.0
    %299 = vmatpush1.msra.mxu0 %v213
    %300 = vmatprep.subr.mxu0 0.0
    %301 = vmatpush1.msra.mxu0 0.0
    %302 = vmatprep.subr.mxu0 0.0
    %303 = vmatpush1.msra.mxu0 0.0
    %304 = vmatprep.subr.mxu0 0.0
    %305 = vmatpush1.msra.mxu0 0.0
    %306 = vmatprep.subr.mxu0 0.0
    %307 = vmatpush1.msra.mxu0 0.0
    %308 = vmatprep.subr.mxu0 0.0
    %309 = vmatpush1.msra.mxu0 0.0
    %310 = vmatprep.subr.mxu0 0.0
    %311 = vmatpush1.msra.mxu0 0.0
    %312 = vmatprep.subr.mxu0 0.0
    %313 = vmatpush1.msra.mxu0 0.0
    %314 = vmatprep.subr.mxu0 0.0
    %315 = vmatpush1.msra.mxu0 0.0
    %316 = vmatprep.subr.mxu0 0.0
    %317 = vmatpush1.msra.mxu0 0.0
    %318 = vmatprep.subr.mxu0 0.0
    %319 = vmatpush1.msra.mxu0 0.0
    %320 = vmatprep.subr.mxu0 0.0
    %321 = vmatpush1.msra.mxu0 0.0
    %322 = vmatprep.subr.mxu0 0.0
    %323 = vmatpush1.msra.mxu0 0.0
    %324 = vmatprep.subr.mxu0 0.0
    %325 = vmatpush1.msra.mxu0 0.0
    %326 = vmatprep.subr.mxu0 0.0
    %327 = vmatpush1.msra.mxu0 0.0
    %328 = vmatprep.subr.mxu0 0.0
    %329 = vmatpush1.msra.mxu0 0.0
    %330 = vmatprep.subr.mxu0 0.0
    %331 = vmatpush1.msra.mxu0 0.0
    %332 = vmatprep.subr.mxu0 0.0
    %333 = vmatpush1.msra.mxu0 0.0
    %334 = vmatprep.subr.mxu0 0.0
    %335 = vmatpush1.msra.mxu0 0.0
    %336 = vmatprep.subr.mxu0 0.0
    %337 = vmatpush1.msra.mxu0 0.0
    %338 = vmatprep.subr.mxu0 0.0
    %339 = vmatpush1.msra.mxu0 0.0
    %340 = vmatprep.subr.mxu0 0.0
    %341 = vmatpush1.msra.mxu0 0.0
    %342 = vmatprep.subr.mxu0 0.0
    %343 = vmatpush1.msra.mxu0 0.0
    %344 = vmatprep.subr.mxu0 0.0
    %345 = vmatpush1.msra.mxu0 0.0
    %346 = vmatprep.subr.mxu0 0.0
    %347 = vmatpush1.msra.mxu0 0.0
    %348 = vmatprep.subr.mxu0 0.0
    %349 = vmatpush1.msra.mxu0 0.0
    %350 = vmatprep.subr.mxu0 0.0
    %351 = vmatpush1.msra.mxu0 0.0
    %352 = vmatprep.subr.mxu0 0.0
    %353 = vmatpush1.msra.mxu0 0.0
    %354 = vmatprep.subr.mxu0 0.0
    %355 = vmatpush1.msra.mxu0 0.0
    %356 = vmatprep.mubr.f32.mxu0 0.0
    %357 = vmatmul.mubr.f32.gmra.mrb[0].mxu0 %v290
    %v358 = vpop.f32.mrb[0].mxu0
    %v359 = vadd.f32 %v285, %v358
    %v360 = vpop.f32.mrb[0].mxu0
    %361 = vdwg.mxu0
    %v362 = vld [vmem:[%s8] sm:$0x1]
    %v364 = vlaneseq
    %v365 = vshrl.u32 %v364, 7
    %v366 = vsub.s32 0, %v365
    %v367 = vrot.slane %v362, %v366
    %v369 = vadd.f32 %v359, %v367
    %v370 = vmax.f32 %v369, 0.0
    %v371 = vld [vmem:[%s9] sm:$0xff]
    %v372 = vld [vmem:[%s9 + $0x8] sm:$0xff]
    %v373 = vld [vmem:[%s9 + $0x10] sm:$0xff]
    %v374 = vld [vmem:[%s9 + $0x18] sm:$0xff]
    %v375 = vld [vmem:[%s10] sm:$0x1]
    %v377 = vlaneseq
    %v378 = vshrl.u32 %v377, 7
    %v379 = vsub.s32 0, %v378
    %v380 = vrot.slane %v375, %v379
    %v383 = vsel %vm288, %v370, 0
    %385 = vmatprep.subr.mxu0 0.0
    %386 = vmatpush1.msra.mxu0 %v371
    %387 = vmatprep.subr.mxu0 0.0
    %388 = vmatpush1.msra.mxu0 %v372
    %389 = vmatprep.subr.mxu0 0.0
    %390 = vmatpush1.msra.mxu0 %v373
    %391 = vmatprep.subr.mxu0 0.0
    %392 = vmatpush1.msra.mxu0 %v374
    %393 = vmatprep.subr.mxu0 0.0
    %394 = vmatpush1.msra.mxu0 0.0
    %395 = vmatprep.subr.mxu0 0.0
    %396 = vmatpush1.msra.mxu0 0.0
    %397 = vmatprep.subr.mxu0 0.0
    %398 = vmatpush1.msra.mxu0 0.0
    %399 = vmatprep.subr.mxu0 0.0
    %400 = vmatpush1.msra.mxu0 0.0
    %401 = vmatprep.subr.mxu0 0.0
    %402 = vmatpush1.msra.mxu0 0.0
    %403 = vmatprep.subr.mxu0 0.0
    %404 = vmatpush1.msra.mxu0 0.0
    %405 = vmatprep.subr.mxu0 0.0
    %406 = vmatpush1.msra.mxu0 0.0
    %407 = vmatprep.subr.mxu0 0.0
    %408 = vmatpush1.msra.mxu0 0.0
    %409 = vmatprep.subr.mxu0 0.0
    %410 = vmatpush1.msra.mxu0 0.0
    %411 = vmatprep.subr.mxu0 0.0
    %412 = vmatpush1.msra.mxu0 0.0
    %413 = vmatprep.subr.mxu0 0.0
    %414 = vmatpush1.msra.mxu0 0.0
    %415 = vmatprep.subr.mxu0 0.0
    %416 = vmatpush1.msra.mxu0 0.0
    %417 = vmatprep.subr.mxu0 0.0
    %418 = vmatpush1.msra.mxu0 0.0
    %419 = vmatprep.subr.mxu0 0.0
    %420 = vmatpush1.msra.mxu0 0.0
    %421 = vmatprep.subr.mxu0 0.0
    %422 = vmatpush1.msra.mxu0 0.0
    %423 = vmatprep.subr.mxu0 0.0
    %424 = vmatpush1.msra.mxu0 0.0
    %425 = vmatprep.subr.mxu0 0.0
    %426 = vmatpush1.msra.mxu0 0.0
    %427 = vmatprep.subr.mxu0 0.0
    %428 = vmatpush1.msra.mxu0 0.0
    %429 = vmatprep.subr.mxu0 0.0
    %430 = vmatpush1.msra.mxu0 0.0
    %431 = vmatprep.subr.mxu0 0.0
    %432 = vmatpush1.msra.mxu0 0.0
    %433 = vmatprep.subr.mxu0 0.0
    %434 = vmatpush1.msra.mxu0 0.0
    %435 = vmatprep.subr.mxu0 0.0
    %436 = vmatpush1.msra.mxu0 0.0
    %437 = vmatprep.subr.mxu0 0.0
    %438 = vmatpush1.msra.mxu0 0.0
    %439 = vmatprep.subr.mxu0 0.0
    %440 = vmatpush1.msra.mxu0 0.0
    %441 = vmatprep.subr.mxu0 0.0
    %442 = vmatpush1.msra.mxu0 0.0
    %443 = vmatprep.subr.mxu0 0.0
    %444 = vmatpush1.msra.mxu0 0.0
    %445 = vmatprep.subr.mxu0 0.0
    %446 = vmatpush1.msra.mxu0 0.0
    %447 = vmatprep.subr.mxu0 0.0
    %448 = vmatpush1.msra.mxu0 0.0
    %449 = vmatprep.mubr.f32.mxu0 0.0
    %450 = vmatmul.mubr.f32.gmra.mrb[0].mxu0 %v383
    %v451 = vpop.f32.mrb[0].mxu0
    %v452 = vadd.f32 %v380, %v451
    %v453 = vpop.f32.mrb[0].mxu0
    %454 = vdwg.mxu0
    %vm455 = vcmask 195584
    %456 = vst.msk [vmem:[#allocation2] sm:$0xff] %vm455, %v452
    // Predicated region
    $region46: #{tpu_custom_call.1} parent=1 // pred_check
      _
    $region47: #{tpu_custom_call.1} parent=1 // pred_check_branch
      %458 = sbr.rel (0) target = $region49
    $region48: #{tpu_custom_call.1} parent=1 // pred_region
      %s460 = ssub.s32 128, 128
      %461 = vsyncadd [#allocation3], %s460
      %s463 = sshll.u32 [#allocation2], 4
      %s464 = int_to_ptr.vmem [resolvable:$true] %s463
      %466 = dma.vmem_to_hbm [thread:$0]  %s464, 128, %s11, [#allocation3]
    $region49: #{tpu_custom_call.1} parent=1 // pred_fallthru
      _
    // Predicated region
    $region50: #{tpu_custom_call.1} parent=1 // pred_check
      _
    $region51: #{tpu_custom_call.1} parent=1 // pred_check_branch
      %468 = sbr.rel (0) target = $region53
    $region52: #{tpu_custom_call.1} parent=1 // pred_region
      %469 = dma.done [#allocation3], 128
    $region53: #{tpu_custom_call.1} parent=1 // pred_fallthru
      _
    %470 = vsyncpa [#allocation3], 1

</llo_original>
